<compile_context>
chip_gen: v7x
topology: tpu7x:2x2x1
jax: 0.10.0
libtpu: 0.0.40
codegen_flags: <defaults>
</compile_context>

<pallas_src>
import functools

import jax
import jax.numpy as jnp
from jax.experimental import pallas as pl
from jax.experimental.pallas import tpu as pltpu


def _vmem_capacity_bytes():
    """Chip VMEM capacity (falls back to a conservative 64 MiB, the v7x per-TC size)."""
    try:
        cap = int(pltpu.get_tpu_info().vmem_capacity_bytes)
        if cap > 0:
            return cap
    except Exception:
        pass
    return 64 * 1024 * 1024


# ------------------------------- kernels ----------------------------------- #

def _kv_proj_kernel(c_ref, wk_ref, wv_ref, k_ref, v_ref):
    """Context K/V projection. ctx arrives bf16 (cast once in the wrapper); bf16 MXU
    operands, f32 accumulation, bf16 results (halves the K/V HBM round-trip)."""
    c = c_ref[...]                                              # (tr, D) bf16
    k_ref[...] = jnp.dot(c, wk_ref[...],
                         preferred_element_type=jnp.float32).astype(jnp.bfloat16)
    v_ref[...] = jnp.dot(c, wv_ref[...],
                         preferred_element_type=jnp.float32).astype(jnp.bfloat16)


def _fused_branch_kernel(x_ref, k_ref, v_ref, g1_ref, b1_ref, g2_ref, b2_ref,
                         wq_ref, wo_ref, bo_ref, o_ref, xn_ref, a_ref,
                         *, group, dim_head, scale):
    """Fused LN -> Q proj -> softmax attention -> out proj -> bias + residual.

    Grid point (b, h, g):
      b: batch                         ("parallel")
      h: torch-view head / row block   ("parallel")   -> x/out rows [h*rq, (h+1)*rq)
      g: group of `group` heads        ("arbitrary")  -> Wq[:, g*G*dh:(g+1)*G*dh], Wo rows

    K/V arrive in the torch-view layout (Nk, dh) per (b, h) and stay VMEM resident across g.
    The double LayerNorm is computed once per (b, h) (cached in xn_ref); the out-projection
    partials accumulate directly into the f32 output block (initialized with bias+residual).
    """
    g = pl.program_id(2)

    @pl.when(g == 0)
    def _init():
        eps = 1e-5

        def _ln(v, gamma, beta):
            mu = jnp.mean(v, axis=-1, keepdims=True)
            d = v - mu
            var = jnp.mean(d * d, axis=-1, keepdims=True)
            return d * jax.lax.rsqrt(var + eps) * gamma + beta

        x = x_ref[...]                                          # (rq, D) f32
        # PreNorm LayerNorm then the Attention-internal LayerNorm (both f32), with the
        # 1/sqrt(dim_head) score scale folded into the small q operand; cached for g > 0.
        xn = _ln(_ln(x, g1_ref[...], b1_ref[...]), g2_ref[...], b2_ref[...])
        xn_ref[...] = (xn * scale).astype(jnp.bfloat16)
        # Initialize the output block with out_proj bias + ProjectInOut residual (raw x);
        # the g steps accumulate the out-projection partial sums on top.
        o_ref[...] = x + bo_ref[...]

    xn = xn_ref[...]                                            # (rq, D) bf16
    # Q columns of this head group: view rows i = a*heads + (g*group + gl).
    q_blk = jnp.dot(xn, wq_ref[...],
                    preferred_element_type=jnp.float32).astype(jnp.bfloat16)  # (rq, G*dh)

    k_h = k_ref[...]                                            # (Nk, dh) bf16
    v_h = v_ref[...]                                            # (Nk, dh) bf16
    dimnums = (((1,), (1,)), ((), ()))                          # q (rq,dh) . k (Nk,dh)^T

    for gl in range(group):                                     # static unroll (small)
        q_g = q_blk[:, gl * dim_head:(gl + 1) * dim_head]       # (rq, dh) bf16
        s = jax.lax.dot_general(q_g, k_h, dimnums,
                                preferred_element_type=jnp.float32)         # (rq, Nk)
        s = s - jnp.max(s, axis=-1, keepdims=True)
        p = jnp.exp(s)
        l = jnp.sum(p, axis=-1, keepdims=True)
        pv = jnp.dot(p.astype(jnp.bfloat16), v_h,
                     preferred_element_type=jnp.float32)                    # (rq, dh)
        # Exact softmax normalization on the small (rq, dh) result, then stash as the
        # lane-slice of the out-projection LHS.
        a_ref[:, gl * dim_head:(gl + 1) * dim_head] = (pv / l).astype(jnp.bfloat16)

    # One out-projection matmul per head group (K = group*dh), accumulated across g.
    o_ref[...] += jnp.dot(a_ref[...], wo_ref[...], preferred_element_type=jnp.float32)


# ------------------------------- wrappers ----------------------------------- #

def _kv_col_tile(heads, dim_head, target=2048):
    """Largest multiple of dim_head that divides inner and stays <= ~2048 lanes."""
    for k in range(heads, 0, -1):
        if heads % k == 0 and k * dim_head <= max(dim_head, target):
            return k * dim_head
    return dim_head


def _kv_row_tile(n, target=1024):
    """Row tile for the Stage A context block (bounds the VMEM working set on v7x)."""
    if n <= target:
        return n
    for t in range(target, 15, -16):
        if n % t == 0:
            return t
    return n


def _pick_group(heads, dim_head, d_model, vmem_limit):
    """Heads per g step: largest divisor of heads whose double-buffered bf16 Wq/Wo tiles
    fit in ~half the VMEM budget (near-full residency on 128 MiB v5e/v6e; 2-4 head groups
    on 64 MiB v7x for the real dim=768, dim_head=768 module)."""
    budget = vmem_limit // 2
    best = 1
    for g in range(1, heads + 1):
        if heads % g == 0:
            tile_bytes = 2 * 2 * 2 * d_model * g * dim_head   # Wq+Wo, 2 buffers, bf16
            if tile_bytes <= budget:
                best = g
    return best


def cross_attention_branch(x, ctx, p, *, heads, dim_head):
    B, Nq, D = x.shape
    _, Nk, _ = ctx.shape
    inner = heads * dim_head

    assert Nq % heads == 0, "this tiling requires heads | Nq (torch-view row blocks)"
    rq = Nq // heads
    assert rq % 8 == 0 or rq == Nq, "Nq/heads must be a multiple of 8 (f32 sublane tiling)"
    assert dim_head % 128 == 0 or heads == 1, "dim_head must be a multiple of 128 lanes"

    vmem_cap = _vmem_capacity_bytes()
    vmem_limit = min((vmem_cap * 3) // 4, 100 * 1024 * 1024)

    # ---- Stage A: context K/V projections (bf16 in/out), row + column tiled ----
    ctx_bf16 = ctx.astype(jnp.bfloat16)        # cast once; halves ctx HBM/VMEM traffic
    tn = _kv_col_tile(heads, dim_head)
    tr = _kv_row_tile(Nk)
    k_all, v_all = pl.pallas_call(
        _kv_proj_kernel,
        grid=(B, Nk // tr, inner // tn),
        in_specs=[
            pl.BlockSpec((None, tr, D), lambda b, r, j: (b, r, 0)),
            pl.BlockSpec((D, tn), lambda b, r, j: (0, j)),
            pl.BlockSpec((D, tn), lambda b, r, j: (0, j)),
        ],
        out_specs=[
            pl.BlockSpec((None, tr, tn), lambda b, r, j: (b, r, j)),
            pl.BlockSpec((None, tr, tn), lambda b, r, j: (b, r, j)),
        ],
        out_shape=[
            jax.ShapeDtypeStruct((B, Nk, inner), jnp.bfloat16),
            jax.ShapeDtypeStruct((B, Nk, inner), jnp.bfloat16),
        ],
        compiler_params=pltpu.CompilerParams(
            dimension_semantics=("parallel", "parallel", "parallel"),
            vmem_limit_bytes=vmem_limit),
    )(ctx_bf16, p["wk"], p["wv"])

    # Free row-major reshape == the torch `.view(-1, heads, n, dim_head)` of K/V.
    k_resh = k_all.reshape(B, heads, Nk, dim_head)
    v_resh = v_all.reshape(B, heads, Nk, dim_head)

    # ---- Stage B: fused LN + Q + attention + out-projection + bias + residual ----
    group = _pick_group(heads, dim_head, D, vmem_limit)
    n_g = heads // group

    out = pl.pallas_call(
        functools.partial(_fused_branch_kernel, group=group, dim_head=dim_head,
                          scale=float(dim_head) ** -0.5),
        grid=(B, heads, n_g),
        in_specs=[
            pl.BlockSpec((None, rq, D), lambda b, h, g: (b, h, 0)),                   # x rows of block h
            pl.BlockSpec((None, None, Nk, dim_head), lambda b, h, g: (b, h, 0, 0)),   # K view head h
            pl.BlockSpec((None, None, Nk, dim_head), lambda b, h, g: (b, h, 0, 0)),   # V view head h
            pl.BlockSpec((1, D), lambda b, h, g: (0, 0)),                             # LN_pre gamma
            pl.BlockSpec((1, D), lambda b, h, g: (0, 0)),                             # LN_pre beta
            pl.BlockSpec((1, D), lambda b, h, g: (0, 0)),                             # LN_attn gamma
            pl.BlockSpec((1, D), lambda b, h, g: (0, 0)),                             # LN_attn beta
            pl.BlockSpec((D, group * dim_head), lambda b, h, g: (0, g)),              # Wq column group
            pl.BlockSpec((group * dim_head, D), lambda b, h, g: (g, 0)),              # Wo row group
            pl.BlockSpec((1, D), lambda b, h, g: (0, 0)),                             # out_proj bias
        ],
        out_specs=pl.BlockSpec((None, rq, D), lambda b, h, g: (b, h, 0)),
        out_shape=jax.ShapeDtypeStruct((B, Nq, D), jnp.float32),
        scratch_shapes=[
            pltpu.VMEM((rq, D), jnp.bfloat16),                  # cached LN(LN(x)) * scale
            pltpu.VMEM((rq, group * dim_head), jnp.bfloat16),   # out-projection LHS slab
        ],
        compiler_params=pltpu.CompilerParams(
            dimension_semantics=("parallel", "parallel", "arbitrary"),
            vmem_limit_bytes=vmem_limit),
    )(x, k_resh, v_resh, p["g1"], p["b1"], p["g2"], p["b2"],
      p["wq"], p["wo"], p["bo"])
    return out


def cross_attention_module_vit(feat1, feat2, params, *, heads, dim_head):
    # copy.deepcopy => cross_att1 has identical parameter values to cross_att.
    out1 = cross_attention_branch(feat1, feat2, params, heads=heads, dim_head=dim_head)
    out2 = cross_attention_branch(feat2, feat1, params, heads=heads, dim_head=dim_head)
    return out1, out2


# ---------------------------- params & reference ----------------------------- #

def init_params(key, dim, heads, dim_head):
    inner = heads * dim_head
    ks = jax.random.split(key, 9)
    s_in = 1.0 / jnp.sqrt(jnp.float32(dim))
    s_inner = 1.0 / jnp.sqrt(jnp.float32(inner))
    return {
        # LayerNorm params / bias stay f32, stored (1, D) so they broadcast in-kernel.
        "g1": jnp.ones((1, dim), jnp.float32) + 0.25 * jax.random.normal(ks[0], (1, dim)),
        "b1": 0.25 * jax.random.normal(ks[1], (1, dim), jnp.float32),
        "g2": jnp.ones((1, dim), jnp.float32) + 0.25 * jax.random.normal(ks[2], (1, dim)),
        "b2": 0.25 * jax.random.normal(ks[3], (1, dim), jnp.float32),
        # Linear weights pre-transposed to (in, out) and stored bf16 (MXU operands,
        # halved HBM/VMEM footprint); all matmuls accumulate in f32.
        "wq": (s_in * jax.random.normal(ks[4], (dim, inner), jnp.float32)).astype(jnp.bfloat16),
        "wk": (s_in * jax.random.normal(ks[5], (dim, inner), jnp.float32)).astype(jnp.bfloat16),
        "wv": (s_in * jax.random.normal(ks[6], (dim, inner), jnp.float32)).astype(jnp.bfloat16),
        "wo": (s_inner * jax.random.normal(ks[7], (inner, dim), jnp.float32)).astype(jnp.bfloat16),
        "bo": 0.25 * jax.random.normal(ks[8], (1, dim), jnp.float32),
    }


def reference_branch(x, ctx, p, *, heads, dim_head):
    """Pure-f32 JAX mirror of the PyTorch eval forward (weights upcast from bf16 storage)."""
    eps = 1e-5

    def ln(v, g, b):
        mu = v.mean(-1, keepdims=True)
        var = ((v - mu) ** 2).mean(-1, keepdims=True)
        return (v - mu) / jnp.sqrt(var + eps) * g + b

    B, Nq, _ = x.shape
    Nk = ctx.shape[1]
    inner = heads * dim_head
    wq = p["wq"].astype(jnp.float32)
    wk = p["wk"].astype(jnp.float32)
    wv = p["wv"].astype(jnp.float32)
    wo = p["wo"].astype(jnp.float32)
    xn = ln(ln(x, p["g1"][0], p["b1"][0]), p["g2"][0], p["b2"][0])
    q = xn @ wq
    k = ctx @ wk
    v = ctx @ wv
    # torch `.view(-1, heads, n, dim_head)` == row-major reshape.
    qh = q.reshape(B, heads, Nq, dim_head)
    kh = k.reshape(B, heads, Nk, dim_head)
    vh = v.reshape(B, heads, Nk, dim_head)
    s = jnp.einsum("bhid,bhjd->bhij", qh, kh) * (float(dim_head) ** -0.5)
    w = jax.nn.softmax(s, axis=-1)
    o = jnp.einsum("bhij,bhjd->bhid", w, vh).reshape(B, Nq, inner)
    return o @ wo + p["bo"][0] + x


# ----------------------------------- main ------------------------------------ #

if __name__ == "__main__":
    # Small stand-ins for the module's dim=768, heads=16, dim_head=768 (shapes chosen so the
    # per-head row blocks satisfy TPU (sublane, lane) tiling: N % (8*heads) == 0, dh % 128 == 0).
    B, N, D = 2, 64, 128
    HEADS, DIM_HEAD = 4, 128          # inner = 512, per-head query row blocks rq = 16

    key = jax.random.PRNGKey(0)
    k1, k2 = jax.random.split(key)
    feat1 = jax.random.normal(k1, (B, N, D), jnp.float32)
    feat2 = jax.random.normal(k2, (B, N, D), jnp.float32)
    params = init_params(jax.random.PRNGKey(42), D, HEADS, DIM_HEAD)

    out1, out2 = cross_attention_module_vit(
        feat1, feat2, params, heads=HEADS, dim_head=DIM_HEAD)
    jax.block_until_ready((out1, out2))

    ref1 = reference_branch(feat1, feat2, params, heads=HEADS, dim_head=DIM_HEAD)
    ref2 = reference_branch(feat2, feat1, params, heads=HEADS, dim_head=DIM_HEAD)
    assert out1.shape == (B, N, D) and out2.shape == (B, N, D)
    # Tolerance accounts for bf16 MXU operands in the kernel vs the f32 reference.
    err1 = float(jnp.max(jnp.abs(out1 - ref1)))
    err2 = float(jnp.max(jnp.abs(out2 - ref2)))
    assert jnp.allclose(out1, ref1, atol=5e-2, rtol=5e-2), err1
    assert jnp.allclose(out2, ref2, atol=5e-2, rtol=5e-2), err2
    print("KERNEL_OK")
</pallas_src>

<mosaic_0001>
module attributes {stable_mosaic.version = 11 : i64} {
  func.func @_kv_proj_kernel(%arg0: i32, %arg1: i32, %arg2: i32, %arg3: memref<1x64x128xbf16, #tpu.memory_space<vmem>>, %arg4: memref<128x512xbf16, #tpu.memory_space<vmem>>, %arg5: memref<128x512xbf16, #tpu.memory_space<vmem>>, %arg6: memref<1x64x512xbf16, #tpu.memory_space<vmem>>, %arg7: memref<1x64x512xbf16, #tpu.memory_space<vmem>>) attributes {dimension_semantics = [#tpu.dimension_semantics<parallel>, #tpu.dimension_semantics<parallel>, #tpu.dimension_semantics<parallel>], iteration_bounds = array<i64: 2, 1, 1>, scalar_prefetch = 0 : i64, scratch_operands = 0 : i64, tpu.core_type = #tpu.core_type<tc>, window_params = [{transform_indices = @transform_0, window_bounds = array<i64: 1, 64, 128>}, {transform_indices = @transform_1, window_bounds = array<i64: 128, 512>}, {transform_indices = @transform_2, window_bounds = array<i64: 128, 512>}, {transform_indices = @transform_3, window_bounds = array<i64: 1, 64, 512>}, {transform_indices = @transform_4, window_bounds = array<i64: 1, 64, 512>}]} {
    %c0 = arith.constant 0 : index
    %c0_0 = arith.constant 0 : index
    %c0_1 = arith.constant 0 : index
    %0 = vector.load %arg3[%c0, %c0_0, %c0_1] : memref<1x64x128xbf16, #tpu.memory_space<vmem>>, vector<1x64x128xbf16>
    %1 = vector.shape_cast %0 : vector<1x64x128xbf16> to vector<64x128xbf16>
    %c0_2 = arith.constant 0 : index
    %c0_3 = arith.constant 0 : index
    %2 = vector.load %arg4[%c0_2, %c0_3] : memref<128x512xbf16, #tpu.memory_space<vmem>>, vector<128x512xbf16>
    %cst = arith.constant dense<0.000000e+00> : vector<64x512xf32>
    %3 = tpu.matmul %1, %2, %cst {dimension_numbers = #tpu.dot_dimension_numbers<[1], [0], [0], [1], [0, 0, 1, 1], [], []>} : vector<64x128xbf16>, vector<128x512xbf16>, vector<64x512xf32> -> vector<64x512xf32>
    %4 = arith.truncf %3 : vector<64x512xf32> to vector<64x512xbf16>
    %c0_4 = arith.constant 0 : index
    %c0_5 = arith.constant 0 : index
    %c0_6 = arith.constant 0 : index
    %5 = vector.load %arg6[%c0_4, %c0_5, %c0_6] : memref<1x64x512xbf16, #tpu.memory_space<vmem>>, vector<1x64x512xbf16>
    %6 = vector.shape_cast %5 : vector<1x64x512xbf16> to vector<64x512xbf16>
    %7 = vector.shape_cast %4 : vector<64x512xbf16> to vector<1x64x512xbf16>
    tpu.vector_store %arg6[%c0_4, %c0_5, %c0_6], %7 {strides = array<i32>} : memref<1x64x512xbf16, #tpu.memory_space<vmem>>, vector<1x64x512xbf16>,
    %c0_7 = arith.constant 0 : index
    %c0_8 = arith.constant 0 : index
    %8 = vector.load %arg5[%c0_7, %c0_8] : memref<128x512xbf16, #tpu.memory_space<vmem>>, vector<128x512xbf16>
    %cst_9 = arith.constant dense<0.000000e+00> : vector<64x512xf32>
    %9 = tpu.matmul %1, %8, %cst_9 {dimension_numbers = #tpu.dot_dimension_numbers<[1], [0], [0], [1], [0, 0, 1, 1], [], []>} : vector<64x128xbf16>, vector<128x512xbf16>, vector<64x512xf32> -> vector<64x512xf32>
    %10 = arith.truncf %9 : vector<64x512xf32> to vector<64x512xbf16>
    %c0_10 = arith.constant 0 : index
    %c0_11 = arith.constant 0 : index
    %c0_12 = arith.constant 0 : index
    %11 = vector.load %arg7[%c0_10, %c0_11, %c0_12] : memref<1x64x512xbf16, #tpu.memory_space<vmem>>, vector<1x64x512xbf16>
    %12 = vector.shape_cast %11 : vector<1x64x512xbf16> to vector<64x512xbf16>
    %13 = vector.shape_cast %10 : vector<64x512xbf16> to vector<1x64x512xbf16>
    tpu.vector_store %arg7[%c0_10, %c0_11, %c0_12], %13 {strides = array<i32>} : memref<1x64x512xbf16, #tpu.memory_space<vmem>>, vector<1x64x512xbf16>,
    return
  }
  func.func @transform_0(%arg0: i32, %arg1: i32, %arg2: i32) -> (i32, i32, i32) {
    %c0_i32 = arith.constant 0 : i32
    %c0_i32_0 = arith.constant 0 : i32
    return %arg0, %arg1, %c0_i32 : i32, i32, i32
  }
  func.func @transform_1(%arg0: i32, %arg1: i32, %arg2: i32) -> (i32, i32) {
    %c0_i32 = arith.constant 0 : i32
    %c0_i32_0 = arith.constant 0 : i32
    return %c0_i32, %arg2 : i32, i32
  }
  func.func @transform_2(%arg0: i32, %arg1: i32, %arg2: i32) -> (i32, i32) {
    %c0_i32 = arith.constant 0 : i32
    %c0_i32_0 = arith.constant 0 : i32
    return %c0_i32, %arg2 : i32, i32
  }
  func.func @transform_3(%arg0: i32, %arg1: i32, %arg2: i32) -> (i32, i32, i32) {
    %c0_i32 = arith.constant 0 : i32
    return %arg0, %arg1, %arg2 : i32, i32, i32
  }
  func.func @transform_4(%arg0: i32, %arg1: i32, %arg2: i32) -> (i32, i32, i32) {
    %c0_i32 = arith.constant 0 : i32
    return %arg0, %arg1, %arg2 : i32, i32, i32
  }
}

</mosaic_0001>

<llo_original>
// kernel: tpu_custom_call.1
$region0: #{tpu_custom_call.1}
  #allocation0 [shape = 'u32[]', space=smem, size = 0x4, offset = 0x4, fixed_abs, tag = 'smem constant byte address 0x4 - core index']
  #allocation1 [shape = 'u32[144,128]{1,0:T(1,128)}', space=vmem, size = 0x12000, scoped, tag = 'internal scratch']
  %s0 = inlined_call_operand.hbm [shape: bf16[2,64,128], index: 0, kind: input, shape index: {}]
  %s1 = inlined_call_operand.hbm [shape: bf16[128,512], index: 1, kind: input, shape index: {}]
  %s2 = inlined_call_operand.hbm [shape: bf16[128,512], index: 2, kind: input, shape index: {}]
  %s3 = inlined_call_operand.hbm [shape: bf16[2,64,512], index: 3, kind: output, shape index: {0}]
  %s4 = inlined_call_operand.hbm [shape: bf16[2,64,512], index: 4, kind: output, shape index: {1}]
  %5 = xla_tuple %s3, %s4
  %s6 = sld [smem:[#allocation0]]
  $region65: #{tpu_custom_call.1} parent=0
    _
  %s8 = ssub.s32 1, %s6
  %s9 = scalar_select 0, %s8, %s6
  $region1: #{tpu_custom_call.1} parent=0
    #allocation2 [shape = 'u8[32768]{0}', space=vmem, size = 0x8000, scoped, tag = 'input window, operand 0']
    #allocation3 [shape = 's32[2]{0}', space=sflag, size = 0x8, scoped, tag = 'scoped memory for tpu_custom_call.1']
    #allocation4 [shape = 's32[2]{0}', space=sflag, size = 0x8, scoped, tag = 'scoped memory for tpu_custom_call.1']
    #allocation5 [shape = 'u8[131072]{0}', space=vmem, size = 0x20000, scoped, tag = 'input window, operand 1, single buffered']
    #allocation6 [shape = 's32[1]{0}', space=sflag, size = 0x4, scoped, tag = 'scoped memory for tpu_custom_call.1']
    #allocation7 [shape = 'u8[131072]{0}', space=vmem, size = 0x20000, scoped, tag = 'input window, operand 2, single buffered']
    #allocation8 [shape = 'u8[131072]{0}', space=vmem, size = 0x20000, scoped, tag = 'output window, operand 0']
    #allocation9 [shape = 'u8[131072]{0}', space=vmem, size = 0x20000, scoped, tag = 'output window, operand 1']
    #allocation10 [shape = 's32[2]{0}', space=sflag, size = 0x8, scoped, tag = 'scoped memory for tpu_custom_call.1']
    %10 = vsyncpa [#allocation3], 0
    %s11 = scalar_lea.sflag [#allocation3], 1
    %12 = vsyncpa %s11, 0
    %13 = vsyncpa [#allocation6], 0
    %14 = vsyncpa [#allocation4], 0
    %s15 = scalar_lea.sflag [#allocation4], 1
    %16 = vsyncpa %s15, 0
    %17 = vsyncpa [#allocation10], 0
    %s18 = scalar_lea.sflag [#allocation10], 1
    %19 = vsyncpa %s18, 0
    loop: start=0, step=1, limit=4
    $region2: #{tpu_custom_call.1} parent=1 // loop_pre_header
      _
    $region3: #{tpu_custom_call.1} parent=1 // loop_header
      %s21 = sphi 0, %s25
      %p22 = scmp.ge.s32.totalorder %s21, 4
      %s28 = sphi 0, %s47
      %s29 = sphi 0, %s43
      %s30 = sphi 0, %s39
      %s31 = sphi 0, %s28
      %s32 = sphi 0, %s29
      %s33 = sphi 0, %s30
      %s34 = sphi 0, %s31
      %s35 = sphi 0, %s32
      %s36 = sphi 0, %s33
      %s52 = sphi 0, %s54
      %s55 = sphi 0, %s52
      %s56 = sphi 0, %s55
      %s72 = sphi 0, %s56
      %s78 = sphi 0, %s80
      %s81 = sphi 0, %s78
      %s82 = sphi 0, %s81
      %s98 = sphi 0, %s82
      %s104 = sphi 0, %s106
      %s107 = sphi 0, %s104
      %s108 = sphi 0, %s107
      %s124 = sphi 0, %s108
      %s134 = sphi 0, %s136
      %s137 = sphi 0, %s134
      %s138 = sphi 0, %s137
      %s154 = sphi 0, %s138
      %s164 = sphi 0, %s166
      %s167 = sphi 0, %s164
      %s168 = sphi 0, %s167
      %s184 = sphi 0, %s168
    $region4: #{tpu_custom_call.1} parent=1 // loop_header_branch
      %24 = sbr.rel (%p22) target = $region8
    $region5: #{tpu_custom_call.1} parent=1 // loop_body
      %s26 = ssub.s32 %s21, 1
      %s27 = ssub.s32 %s21, 2
      %s37 = sadd.s32 1, %s30
      %p38 = scmp.ge.s32.totalorder %s37, 1
      %s39 = scalar_select %p38, 0, %s37
      %s40 = sadd.s32 1, %s29
      %s41 = scalar_select %p38, %s40, %s29
      %p42 = scmp.ge.s32.totalorder %s41, 1
      %s43 = scalar_select %p42, 0, %s41
      %s44 = sadd.s32 1, %s28
      %s45 = scalar_select %p42, %s44, %s28
      %p46 = scmp.ge.s32.totalorder %s45, 2
      %s47 = scalar_select %p46, 0, %s45
      %s48 = ssub.s32 %s28, %s47
      %s49 = ssub.s32 %s29, %s43
      %s50 = sor.u32 %s48, %s49
      %p51 = scmp.eq.s32.totalorder %s50, 0
      %s53 = sadd.s32 %s52, 1
      %s54 = scalar_select %p51, %s52, %s53
      %p57 = pneg %p51
      %p58 = scmp.eq.s32.totalorder %s21, 1
      %p59 = por %p57, %p58
      %p60 = scmp.ne.s32.totalorder %s52, %s55
      %p61 = scmp.eq.s32.totalorder %s21, 0
      %p62 = por %p60, %p61
      %p63 = scmp.ne.s32.totalorder %s52, %s55
      %p64 = scmp.eq.s32.totalorder %s26, 1
      %p65 = por %p63, %p64
      %p66 = scmp.ne.s32.totalorder %s55, %s56
      %p67 = scmp.eq.s32.totalorder %s26, 0
      %p68 = por %p66, %p67
      %p69 = scmp.ne.s32.totalorder %s55, %s56
      %p70 = scmp.eq.s32.totalorder %s27, 1
      %p71 = por %p69, %p70
      %p73 = scmp.ne.s32.totalorder %s56, %s72
      %p74 = scmp.eq.s32.totalorder %s27, 0
      %p75 = por %p73, %p74
      %s76 = ssub.s32 %s30, %s39
      %p77 = scmp.eq.s32.totalorder %s76, 0
      %s79 = sadd.s32 %s78, 1
      %s80 = scalar_select %p77, %s78, %s79
      %p83 = pneg %p77
      %p84 = scmp.eq.s32.totalorder %s21, 1
      %p85 = por %p83, %p84
      %p86 = scmp.ne.s32.totalorder %s78, %s81
      %p87 = scmp.eq.s32.totalorder %s21, 0
      %p88 = por %p86, %p87
      %p89 = scmp.ne.s32.totalorder %s78, %s81
      %p90 = scmp.eq.s32.totalorder %s26, 1
      %p91 = por %p89, %p90
      %p92 = scmp.ne.s32.totalorder %s81, %s82
      %p93 = scmp.eq.s32.totalorder %s26, 0
      %p94 = por %p92, %p93
      %p95 = scmp.ne.s32.totalorder %s81, %s82
      %p96 = scmp.eq.s32.totalorder %s27, 1
      %p97 = por %p95, %p96
      %p99 = scmp.ne.s32.totalorder %s82, %s98
      %p100 = scmp.eq.s32.totalorder %s27, 0
      %p101 = por %p99, %p100
      %s102 = ssub.s32 %s30, %s39
      %p103 = scmp.eq.s32.totalorder %s102, 0
      %s105 = sadd.s32 %s104, 1
      %s106 = scalar_select %p103, %s104, %s105
      %p109 = pneg %p103
      %p110 = scmp.eq.s32.totalorder %s21, 1
      %p111 = por %p109, %p110
      %p112 = scmp.ne.s32.totalorder %s104, %s107
      %p113 = scmp.eq.s32.totalorder %s21, 0
      %p114 = por %p112, %p113
      %p115 = scmp.ne.s32.totalorder %s104, %s107
      %p116 = scmp.eq.s32.totalorder %s26, 1
      %p117 = por %p115, %p116
      %p118 = scmp.ne.s32.totalorder %s107, %s108
      %p119 = scmp.eq.s32.totalorder %s26, 0
      %p120 = por %p118, %p119
      %p121 = scmp.ne.s32.totalorder %s107, %s108
      %p122 = scmp.eq.s32.totalorder %s27, 1
      %p123 = por %p121, %p122
      %p125 = scmp.ne.s32.totalorder %s108, %s124
      %p126 = scmp.eq.s32.totalorder %s27, 0
      %p127 = por %p125, %p126
      %s128 = ssub.s32 %s28, %s47
      %s129 = ssub.s32 %s29, %s43
      %s130 = sor.u32 %s128, %s129
      %s131 = ssub.s32 %s30, %s39
      %s132 = sor.u32 %s130, %s131
      %p133 = scmp.eq.s32.totalorder %s132, 0
      %s135 = sadd.s32 %s134, 1
      %s136 = scalar_select %p133, %s134, %s135
      %p139 = pneg %p133
      %p140 = scmp.eq.s32.totalorder %s21, 1
      %p141 = por %p139, %p140
      %p142 = scmp.ne.s32.totalorder %s134, %s137
      %p143 = scmp.eq.s32.totalorder %s21, 0
      %p144 = por %p142, %p143
      %p145 = scmp.ne.s32.totalorder %s134, %s137
      %p146 = scmp.eq.s32.totalorder %s26, 1
      %p147 = por %p145, %p146
      %p148 = scmp.ne.s32.totalorder %s137, %s138
      %p149 = scmp.eq.s32.totalorder %s26, 0
      %p150 = por %p148, %p149
      %p151 = scmp.ne.s32.totalorder %s137, %s138
      %p152 = scmp.eq.s32.totalorder %s27, 1
      %p153 = por %p151, %p152
      %p155 = scmp.ne.s32.totalorder %s138, %s154
      %p156 = scmp.eq.s32.totalorder %s27, 0
      %p157 = por %p155, %p156
      %s158 = ssub.s32 %s28, %s47
      %s159 = ssub.s32 %s29, %s43
      %s160 = sor.u32 %s158, %s159
      %s161 = ssub.s32 %s30, %s39
      %s162 = sor.u32 %s160, %s161
      %p163 = scmp.eq.s32.totalorder %s162, 0
      %s165 = sadd.s32 %s164, 1
      %s166 = scalar_select %p163, %s164, %s165
      %p169 = pneg %p163
      %p170 = scmp.eq.s32.totalorder %s21, 1
      %p171 = por %p169, %p170
      %p172 = scmp.ne.s32.totalorder %s164, %s167
      %p173 = scmp.eq.s32.totalorder %s21, 0
      %p174 = por %p172, %p173
      %p175 = scmp.ne.s32.totalorder %s164, %s167
      %p176 = scmp.eq.s32.totalorder %s26, 1
      %p177 = por %p175, %p176
      %p178 = scmp.ne.s32.totalorder %s167, %s168
      %p179 = scmp.eq.s32.totalorder %s26, 0
      %p180 = por %p178, %p179
      %p181 = scmp.ne.s32.totalorder %s167, %s168
      %p182 = scmp.eq.s32.totalorder %s27, 1
      %p183 = por %p181, %p182
      %p185 = scmp.ne.s32.totalorder %s168, %s184
      %p186 = scmp.eq.s32.totalorder %s27, 0
      %p187 = por %p185, %p186
      %p188 = scmp.le.s32.totalorder 1, %s21
      %p189 = scmp.lt.s32.totalorder %s21, 3
      %p190 = pnand %p188, %p189
      %p191 = pneg %p190
      // Predicated region
      $region9: #{tpu_custom_call.1} parent=5 // pred_check
        _
      $region10: #{tpu_custom_call.1} parent=5 // pred_check_branch
        %193 = sbr.rel (%p190) target = $region12
      $region11: #{tpu_custom_call.1} parent=5 // pred_region
        %s194 = ssub.s32 %s21, 1
        // Predicated region
        $region13: #{tpu_custom_call.1} parent=11 // pred_check
          %p195 = pneg %p94
        $region14: #{tpu_custom_call.1} parent=11 // pred_check_branch
          %197 = sbr.rel (%p195) target = $region16
        $region15: #{tpu_custom_call.1} parent=11 // pred_region
          %s198 = smul.u32 4, %s33
          %s200 = ssub.s32 4096, 4096
          %201 = vsyncadd [#allocation6], %s200
          %s202 = smul.addr %s198, 64
          %s203 = scalar_lea.hbm %s1, %s202
          %s204 = sshll.u32 [#allocation5], 4
          %s205 = int_to_ptr.vmem [resolvable:$true] %s204
          %210 = dma.hbm_to_vmem [thread:$0]  %s203, 4096, %s205, [#allocation6], 256, 256, 16
        $region16: #{tpu_custom_call.1} parent=11 // pred_fallthru
          _
        // Predicated region
        $region17: #{tpu_custom_call.1} parent=11 // pred_check
          %p211 = pneg %p120
        $region18: #{tpu_custom_call.1} parent=11 // pred_check_branch
          %213 = sbr.rel (%p211) target = $region20
        $region19: #{tpu_custom_call.1} parent=11 // pred_region
          %s214 = smul.u32 4, %s33
          %s216 = ssub.s32 4096, 4096
          %217 = vsyncadd [#allocation6], %s216
          %s218 = smul.addr %s214, 64
          %s219 = scalar_lea.hbm %s2, %s218
          %s220 = sshll.u32 [#allocation7], 4
          %s221 = int_to_ptr.vmem [resolvable:$true] %s220
          %226 = dma.hbm_to_vmem [thread:$0]  %s219, 4096, %s221, [#allocation6], 256, 256, 16
        $region20: #{tpu_custom_call.1} parent=11 // pred_fallthru
          _
      $region12: #{tpu_custom_call.1} parent=5 // pred_fallthru
        _
      %p227 = scmp.lt.s32.totalorder %s21, 2
      // Predicated region
      $region21: #{tpu_custom_call.1} parent=5 // pred_check
        %p228 = pneg %p227
      $region22: #{tpu_custom_call.1} parent=5 // pred_check_branch
        %230 = sbr.rel (%p228) target = $region24
      $region23: #{tpu_custom_call.1} parent=5 // pred_region
        // Predicated region
        $region25: #{tpu_custom_call.1} parent=23 // pred_check
          %p231 = pneg %p62
        $region26: #{tpu_custom_call.1} parent=23 // pred_check_branch
          %233 = sbr.rel (%p231) target = $region28
        $region27: #{tpu_custom_call.1} parent=23 // pred_region
          %s234 = sand.u32 %s52, 1
          %s235 = scalar_lea.sflag [#allocation3], %s234
          %s236 = sand.u32 %s52, 1
          %s237 = smul.addr %s236, 32
          %s238 = scalar_lea.vmem [#allocation2], %s237
          %s239 = smul.u32 8, %s29
          %s241 = ssub.s32 512, 512
          %242 = vsyncadd %s235, %s241
          %s243 = smul.addr %s28, 8
          %s244 = sadd.s32 %s239, %s243
          %s245 = smul.addr %s244, 64
          %s246 = scalar_lea.hbm %s0, %s245
          %s247 = sshll.u32 %s238, 4
          %s248 = int_to_ptr.vmem [resolvable:$true] %s247
          %253 = dma.hbm_to_vmem [thread:$0]  %s246, 512, %s248, %s235, 64, 64, 4
        $region28: #{tpu_custom_call.1} parent=23 // pred_fallthru
          _
      $region24: #{tpu_custom_call.1} parent=5 // pred_fallthru
        _
      %p254 = scmp.le.s32.totalorder 1, %s21
      %p255 = scmp.lt.s32.totalorder %s21, 3
      %p256 = pnand %p254, %p255
      %p257 = pneg %p256
      // Predicated region
      $region29: #{tpu_custom_call.1} parent=5 // pred_check
        _
      $region30: #{tpu_custom_call.1} parent=5 // pred_check_branch
        %259 = sbr.rel (%p256) target = $region32
      $region31: #{tpu_custom_call.1} parent=5 // pred_region
        %s260 = ssub.s32 %s21, 1
        %s261 = sand.u32 %s55, 1
        %s262 = scalar_lea.sflag [#allocation3], %s261
        %s263 = sand.u32 %s55, 1
        %s264 = smul.addr %s263, 32
        %s265 = scalar_lea.vmem [#allocation2], %s264
        // Predicated region
        $region33: #{tpu_custom_call.1} parent=31 // pred_check
          %p266 = pneg %p68
        $region34: #{tpu_custom_call.1} parent=31 // pred_check_branch
          %268 = sbr.rel (%p266) target = $region36
        $region35: #{tpu_custom_call.1} parent=31 // pred_region
          %269 = dma.done %s262, 512
        $region36: #{tpu_custom_call.1} parent=31 // pred_fallthru
          _
        // Predicated region
        $region37: #{tpu_custom_call.1} parent=31 // pred_check
          %p270 = pneg %p94
        $region38: #{tpu_custom_call.1} parent=31 // pred_check_branch
          %272 = sbr.rel (%p270) target = $region40
        $region39: #{tpu_custom_call.1} parent=31 // pred_region
          %273 = dma.done [#allocation6], 4096
        $region40: #{tpu_custom_call.1} parent=31 // pred_fallthru
          _
        // Predicated region
        $region41: #{tpu_custom_call.1} parent=31 // pred_check
          %p274 = pneg %p120
        $region42: #{tpu_custom_call.1} parent=31 // pred_check_branch
          %276 = sbr.rel (%p274) target = $region44
        $region43: #{tpu_custom_call.1} parent=31 // pred_region
          %277 = dma.done [#allocation6], 4096
        $region44: #{tpu_custom_call.1} parent=31 // pred_fallthru
          _
        %s278 = sand.u32 %s55, 1
        %s279 = scalar_lea.sflag [#allocation3], %s278
        %s280 = sand.u32 %s55, 1
        %s281 = smul.addr %s280, 32
        %s282 = scalar_lea.vmem [#allocation2], %s281
        %p283 = pneg %p68
        %p284 = pneg %p65
        %p285 = pneg %p94
        %p286 = pneg %p91
        %p287 = pneg %p120
        %p288 = pneg %p117
        %p289 = pneg %p150
        %p290 = pneg %p147
        %s291 = sand.u32 %s137, 1
        %s292 = scalar_lea.sflag [#allocation4], %s291
        %s293 = sand.u32 %s137, 1
        %s294 = smul.addr %s293, 128
        %s295 = scalar_lea.vmem [#allocation8], %s294
        %p296 = pneg %p180
        %p297 = pneg %p177
        %s298 = sand.u32 %s167, 1
        %s299 = scalar_lea.sflag [#allocation10], %s298
        %s300 = sand.u32 %s167, 1
        %s301 = smul.addr %s300, 128
        %s302 = scalar_lea.vmem [#allocation9], %s301
        %s303 = smul.u32 8, %s32
        %s304 = smul.u32 4, %s33
        %s305 = smul.u32 4, %s33
        %s306 = smul.u32 8, %s32
        %s307 = smul.u32 4, %s33
        %s308 = smul.u32 8, %s32
        %s309 = smul.u32 4, %s33
        %v311 = vld [vmem:[%s265] sm:$0xf]
        %v312 = vld [vmem:[%s265 + $0x4] sm:$0xf]
        %v313 = vld [vmem:[%s265 + $0x8] sm:$0xf]
        %v314 = vld [vmem:[%s265 + $0xc] sm:$0xf]
        %v315 = vld [vmem:[%s265 + $0x10] sm:$0xf]
        %v316 = vld [vmem:[%s265 + $0x14] sm:$0xf]
        %v317 = vld [vmem:[%s265 + $0x18] sm:$0xf]
        %v318 = vld [vmem:[%s265 + $0x1c] sm:$0xf]
        %v319 = vld [vmem:[#allocation5] sm:$0xff]
        %v320 = vld [vmem:[#allocation5 + $0x8] sm:$0xff]
        %v321 = vld [vmem:[#allocation5 + $0x10] sm:$0xff]
        %v322 = vld [vmem:[#allocation5 + $0x18] sm:$0xff]
        %v323 = vld [vmem:[#allocation5 + $0x20] sm:$0xff]
        %v324 = vld [vmem:[#allocation5 + $0x28] sm:$0xff]
        %v325 = vld [vmem:[#allocation5 + $0x30] sm:$0xff]
        %v326 = vld [vmem:[#allocation5 + $0x38] sm:$0xff]
        %v327 = vld [vmem:[#allocation5 + $0x40] sm:$0xff]
        %v328 = vld [vmem:[#allocation5 + $0x48] sm:$0xff]
        %v329 = vld [vmem:[#allocation5 + $0x50] sm:$0xff]
        %v330 = vld [vmem:[#allocation5 + $0x58] sm:$0xff]
        %v331 = vld [vmem:[#allocation5 + $0x60] sm:$0xff]
        %v332 = vld [vmem:[#allocation5 + $0x68] sm:$0xff]
        %v333 = vld [vmem:[#allocation5 + $0x70] sm:$0xff]
        %v334 = vld [vmem:[#allocation5 + $0x78] sm:$0xff]
        %v335 = vld [vmem:[#allocation5 + $0x80] sm:$0xff]
        %v336 = vld [vmem:[#allocation5 + $0x88] sm:$0xff]
        %v337 = vld [vmem:[#allocation5 + $0x90] sm:$0xff]
        %v338 = vld [vmem:[#allocation5 + $0x98] sm:$0xff]
        %v339 = vld [vmem:[#allocation5 + $0xa0] sm:$0xff]
        %v340 = vld [vmem:[#allocation5 + $0xa8] sm:$0xff]
        %v341 = vld [vmem:[#allocation5 + $0xb0] sm:$0xff]
        %v342 = vld [vmem:[#allocation5 + $0xb8] sm:$0xff]
        %v343 = vld [vmem:[#allocation5 + $0xc0] sm:$0xff]
        %v344 = vld [vmem:[#allocation5 + $0xc8] sm:$0xff]
        %v345 = vld [vmem:[#allocation5 + $0xd0] sm:$0xff]
        %v346 = vld [vmem:[#allocation5 + $0xd8] sm:$0xff]
        %v347 = vld [vmem:[#allocation5 + $0xe0] sm:$0xff]
        %v348 = vld [vmem:[#allocation5 + $0xe8] sm:$0xff]
        %v349 = vld [vmem:[#allocation5 + $0xf0] sm:$0xff]
        %v350 = vld [vmem:[#allocation5 + $0xf8] sm:$0xff]
        %v359 = vunpack.c.l.b16 %v311
        %v360 = vunpack.c.l.b16 %v312
        %v361 = vunpack.c.l.b16 %v313
        %v362 = vunpack.c.l.b16 %v314
        %v363 = vunpack.c.l.b16 %v315
        %v364 = vunpack.c.l.b16 %v316
        %v365 = vunpack.c.l.b16 %v317
        %v366 = vunpack.c.l.b16 %v318
        %v367 = vpack.c.b16 %v360, %v359
        %v368 = vpack.c.b16 %v362, %v361
        %v369 = vpack.c.b16 %v364, %v363
        %v370 = vpack.c.b16 %v366, %v365
        %v407 = vunpack.c.l.b16 %v319
        %v408 = vunpack.c.h.b16 %v319
        %v409 = vunpack.c.l.b16 %v320
        %v410 = vunpack.c.h.b16 %v320
        %v411 = vunpack.c.l.b16 %v321
        %v412 = vunpack.c.h.b16 %v321
        %v413 = vunpack.c.l.b16 %v322
        %v414 = vunpack.c.h.b16 %v322
        %v415 = vunpack.c.l.b16 %v323
        %v416 = vunpack.c.h.b16 %v323
        %v417 = vunpack.c.l.b16 %v324
        %v418 = vunpack.c.h.b16 %v324
        %v419 = vunpack.c.l.b16 %v325
        %v420 = vunpack.c.h.b16 %v325
        %v421 = vunpack.c.l.b16 %v326
        %v422 = vunpack.c.h.b16 %v326
        %v423 = vunpack.c.l.b16 %v327
        %v424 = vunpack.c.h.b16 %v327
        %v425 = vunpack.c.l.b16 %v328
        %v426 = vunpack.c.h.b16 %v328
        %v427 = vunpack.c.l.b16 %v329
        %v428 = vunpack.c.h.b16 %v329
        %v429 = vunpack.c.l.b16 %v330
        %v430 = vunpack.c.h.b16 %v330
        %v431 = vunpack.c.l.b16 %v331
        %v432 = vunpack.c.h.b16 %v331
        %v433 = vunpack.c.l.b16 %v332
        %v434 = vunpack.c.h.b16 %v332
        %v435 = vunpack.c.l.b16 %v333
        %v436 = vunpack.c.h.b16 %v333
        %v437 = vunpack.c.l.b16 %v334
        %v438 = vunpack.c.h.b16 %v334
        %v439 = vunpack.c.l.b16 %v335
        %v440 = vunpack.c.h.b16 %v335
        %v441 = vunpack.c.l.b16 %v336
        %v442 = vunpack.c.h.b16 %v336
        %v443 = vunpack.c.l.b16 %v337
        %v444 = vunpack.c.h.b16 %v337
        %v445 = vunpack.c.l.b16 %v338
        %v446 = vunpack.c.h.b16 %v338
        %v447 = vunpack.c.l.b16 %v339
        %v448 = vunpack.c.h.b16 %v339
        %v449 = vunpack.c.l.b16 %v340
        %v450 = vunpack.c.h.b16 %v340
        %v451 = vunpack.c.l.b16 %v341
        %v452 = vunpack.c.h.b16 %v341
        %v453 = vunpack.c.l.b16 %v342
        %v454 = vunpack.c.h.b16 %v342
        %v455 = vunpack.c.l.b16 %v343
        %v456 = vunpack.c.h.b16 %v343
        %v457 = vunpack.c.l.b16 %v344
        %v458 = vunpack.c.h.b16 %v344
        %v459 = vunpack.c.l.b16 %v345
        %v460 = vunpack.c.h.b16 %v345
        %v461 = vunpack.c.l.b16 %v346
        %v462 = vunpack.c.h.b16 %v346
        %v463 = vunpack.c.l.b16 %v347
        %v464 = vunpack.c.h.b16 %v347
        %v465 = vunpack.c.l.b16 %v348
        %v466 = vunpack.c.h.b16 %v348
        %v467 = vunpack.c.l.b16 %v349
        %v468 = vunpack.c.h.b16 %v349
        %v469 = vunpack.c.l.b16 %v350
        %v470 = vunpack.c.h.b16 %v350
        %v471 = vpack.c.b16 %v411, %v407
        %v472 = vpack.c.b16 %v412, %v408
        %v473 = vpack.c.b16 %v413, %v409
        %v474 = vpack.c.b16 %v414, %v410
        %v475 = vpack.c.b16 %v419, %v415
        %v476 = vpack.c.b16 %v420, %v416
        %v477 = vpack.c.b16 %v421, %v417
        %v478 = vpack.c.b16 %v422, %v418
        %v479 = vpack.c.b16 %v427, %v423
        %v480 = vpack.c.b16 %v428, %v424
        %v481 = vpack.c.b16 %v429, %v425
        %v482 = vpack.c.b16 %v430, %v426
        %v483 = vpack.c.b16 %v435, %v431
        %v484 = vpack.c.b16 %v436, %v432
        %v485 = vpack.c.b16 %v437, %v433
        %v486 = vpack.c.b16 %v438, %v434
        %v487 = vpack.c.b16 %v443, %v439
        %v488 = vpack.c.b16 %v444, %v440
        %v489 = vpack.c.b16 %v445, %v441
        %v490 = vpack.c.b16 %v446, %v442
        %v491 = vpack.c.b16 %v451, %v447
        %v492 = vpack.c.b16 %v452, %v448
        %v493 = vpack.c.b16 %v453, %v449
        %v494 = vpack.c.b16 %v454, %v450
        %v495 = vpack.c.b16 %v459, %v455
        %v496 = vpack.c.b16 %v460, %v456
        %v497 = vpack.c.b16 %v461, %v457
        %v498 = vpack.c.b16 %v462, %v458
        %v499 = vpack.c.b16 %v467, %v463
        %v500 = vpack.c.b16 %v468, %v464
        %v501 = vpack.c.b16 %v469, %v465
        %v502 = vpack.c.b16 %v470, %v466
        %535 = vmatprep.subr.bf16.mxu0 %v472
        %536 = vmatpush1.bf16.msra.mxu0 %v471
        %537 = vmatprep.subr.bf16.mxu0 %v476
        %538 = vmatpush1.bf16.msra.mxu0 %v475
        %539 = vmatprep.subr.bf16.mxu0 %v480
        %540 = vmatpush1.bf16.msra.mxu0 %v479
        %541 = vmatprep.subr.bf16.mxu0 %v484
        %542 = vmatpush1.bf16.msra.mxu0 %v483
        %543 = vmatprep.subr.bf16.mxu0 %v488
        %544 = vmatpush1.bf16.msra.mxu0 %v487
        %545 = vmatprep.subr.bf16.mxu0 %v492
        %546 = vmatpush1.bf16.msra.mxu0 %v491
        %547 = vmatprep.subr.bf16.mxu0 %v496
        %548 = vmatpush1.bf16.msra.mxu0 %v495
        %549 = vmatprep.subr.bf16.mxu0 %v500
        %550 = vmatpush1.bf16.msra.mxu0 %v499
        %551 = vmatprep.subr.bf16.mxu0 0
        %552 = vmatpush1.bf16.msra.mxu0 0
        %553 = vmatprep.subr.bf16.mxu0 0
        %554 = vmatpush1.bf16.msra.mxu0 0
        %555 = vmatprep.subr.bf16.mxu0 0
        %556 = vmatpush1.bf16.msra.mxu0 0
        %557 = vmatprep.subr.bf16.mxu0 0
        %558 = vmatpush1.bf16.msra.mxu0 0
        %559 = vmatprep.subr.bf16.mxu0 0
        %560 = vmatpush1.bf16.msra.mxu0 0
        %561 = vmatprep.subr.bf16.mxu0 0
        %562 = vmatpush1.bf16.msra.mxu0 0
        %563 = vmatprep.subr.bf16.mxu0 0
        %564 = vmatpush1.bf16.msra.mxu0 0
        %565 = vmatprep.subr.bf16.mxu0 0
        %566 = vmatpush1.bf16.msra.mxu0 0
        %567 = vmatprep.mubr.bf16.mxu0 0
        %568 = vmatmul.mubr.bf16.gmra.mrb[0].mxu0 %v367
        %v569 = vpop.f32.mrb[0].mxu0
        %v570 = vadd.f32 0.0, %v569
        %v571 = vpop.f32.mrb[0].mxu0
        %v572 = vadd.f32 0.0, %v571
        %v573 = vpop.f32.mrb[0].mxu0
        %v574 = vadd.f32 0.0, %v573
        %v575 = vpop.f32.mrb[0].mxu0
        %v576 = vadd.f32 0.0, %v575
        %577 = vmatprep.mubr.bf16.mxu0 0
        %578 = vmatmul.mubr.bf16.gmra.mrb[0].mxu0 %v368
        %v579 = vpop.f32.mrb[0].mxu0
        %v580 = vadd.f32 0.0, %v579
        %v581 = vpop.f32.mrb[0].mxu0
        %v582 = vadd.f32 0.0, %v581
        %v583 = vpop.f32.mrb[0].mxu0
        %v584 = vadd.f32 0.0, %v583
        %v585 = vpop.f32.mrb[0].mxu0
        %v586 = vadd.f32 0.0, %v585
        %587 = vmatprep.mubr.bf16.mxu0 0
        %588 = vmatmul.mubr.bf16.gmra.mrb[0].mxu0 %v369
        %v589 = vpop.f32.mrb[0].mxu0
        %v590 = vadd.f32 0.0, %v589
        %v591 = vpop.f32.mrb[0].mxu0
        %v592 = vadd.f32 0.0, %v591
        %v593 = vpop.f32.mrb[0].mxu0
        %v594 = vadd.f32 0.0, %v593
        %v595 = vpop.f32.mrb[0].mxu0
        %v596 = vadd.f32 0.0, %v595
        %597 = vmatprep.mubr.bf16.mxu0 0
        %598 = vmatmul.mubr.bf16.gmra.mrb[0].mxu0 %v370
        %v599 = vpop.f32.mrb[0].mxu0
        %v600 = vadd.f32 0.0, %v599
        %v601 = vpop.f32.mrb[0].mxu0
        %v602 = vadd.f32 0.0, %v601
        %v603 = vpop.f32.mrb[0].mxu0
        %v604 = vadd.f32 0.0, %v603
        %v605 = vpop.f32.mrb[0].mxu0
        %v606 = vadd.f32 0.0, %v605
        %607 = vdwg.mxu0
        %608 = vmatprep.subr.bf16.mxu0 %v474
        %609 = vmatpush1.bf16.msra.mxu0 %v473
        %610 = vmatprep.subr.bf16.mxu0 %v478
        %611 = vmatpush1.bf16.msra.mxu0 %v477
        %612 = vmatprep.subr.bf16.mxu0 %v482
        %613 = vmatpush1.bf16.msra.mxu0 %v481
        %614 = vmatprep.subr.bf16.mxu0 %v486
        %615 = vmatpush1.bf16.msra.mxu0 %v485
        %616 = vmatprep.subr.bf16.mxu0 %v490
        %617 = vmatpush1.bf16.msra.mxu0 %v489
        %618 = vmatprep.subr.bf16.mxu0 %v494
        %619 = vmatpush1.bf16.msra.mxu0 %v493
        %620 = vmatprep.subr.bf16.mxu0 %v498
        %621 = vmatpush1.bf16.msra.mxu0 %v497
        %622 = vmatprep.subr.bf16.mxu0 %v502
        %623 = vmatpush1.bf16.msra.mxu0 %v501
        %624 = vmatprep.subr.bf16.mxu0 0
        %625 = vmatpush1.bf16.msra.mxu0 0
        %626 = vmatprep.subr.bf16.mxu0 0
        %627 = vmatpush1.bf16.msra.mxu0 0
        %628 = vmatprep.subr.bf16.mxu0 0
        %629 = vmatpush1.bf16.msra.mxu0 0
        %630 = vmatprep.subr.bf16.mxu0 0
        %631 = vmatpush1.bf16.msra.mxu0 0
        %632 = vmatprep.subr.bf16.mxu0 0
        %633 = vmatpush1.bf16.msra.mxu0 0
        %634 = vmatprep.subr.bf16.mxu0 0
        %635 = vmatpush1.bf16.msra.mxu0 0
        %636 = vmatprep.subr.bf16.mxu0 0
        %637 = vmatpush1.bf16.msra.mxu0 0
        %638 = vmatprep.subr.bf16.mxu0 0
        %639 = vmatpush1.bf16.msra.mxu0 0
        %640 = vmatprep.mubr.bf16.mxu0 0
        %641 = vmatmul.mubr.bf16.gmra.mrb[0].mxu0 %v367
        %v642 = vpop.f32.mrb[0].mxu0
        %v643 = vadd.f32 0.0, %v642
        %v644 = vpop.f32.mrb[0].mxu0
        %v645 = vadd.f32 0.0, %v644
        %v646 = vpop.f32.mrb[0].mxu0
        %v647 = vadd.f32 0.0, %v646
        %v648 = vpop.f32.mrb[0].mxu0
        %v649 = vadd.f32 0.0, %v648
        %650 = vmatprep.mubr.bf16.mxu0 0
        %651 = vmatmul.mubr.bf16.gmra.mrb[0].mxu0 %v368
        %v652 = vpop.f32.mrb[0].mxu0
        %v653 = vadd.f32 0.0, %v652
        %v654 = vpop.f32.mrb[0].mxu0
        %v655 = vadd.f32 0.0, %v654
        %v656 = vpop.f32.mrb[0].mxu0
        %v657 = vadd.f32 0.0, %v656
        %v658 = vpop.f32.mrb[0].mxu0
        %v659 = vadd.f32 0.0, %v658
        %660 = vmatprep.mubr.bf16.mxu0 0
        %661 = vmatmul.mubr.bf16.gmra.mrb[0].mxu0 %v369
        %v662 = vpop.f32.mrb[0].mxu0
        %v663 = vadd.f32 0.0, %v662
        %v664 = vpop.f32.mrb[0].mxu0
        %v665 = vadd.f32 0.0, %v664
        %v666 = vpop.f32.mrb[0].mxu0
        %v667 = vadd.f32 0.0, %v666
        %v668 = vpop.f32.mrb[0].mxu0
        %v669 = vadd.f32 0.0, %v668
        %670 = vmatprep.mubr.bf16.mxu0 0
        %671 = vmatmul.mubr.bf16.gmra.mrb[0].mxu0 %v370
        %v672 = vpop.f32.mrb[0].mxu0
        %v673 = vadd.f32 0.0, %v672
        %v674 = vpop.f32.mrb[0].mxu0
        %v675 = vadd.f32 0.0, %v674
        %v676 = vpop.f32.mrb[0].mxu0
        %v677 = vadd.f32 0.0, %v676
        %v678 = vpop.f32.mrb[0].mxu0
        %v679 = vadd.f32 0.0, %v678
        %680 = vdwg.mxu0
        %v681 = vpack.c.bf16 %v574, %v570
        %v682 = vpack.c.bf16 %v576, %v572
        %v683 = vpack.c.bf16 %v647, %v643
        %v684 = vpack.c.bf16 %v649, %v645
        %v685 = vpack.c.bf16 %v584, %v580
        %v686 = vpack.c.bf16 %v586, %v582
        %v687 = vpack.c.bf16 %v657, %v653
        %v688 = vpack.c.bf16 %v659, %v655
        %v689 = vpack.c.bf16 %v594, %v590
        %v690 = vpack.c.bf16 %v596, %v592
        %v691 = vpack.c.bf16 %v667, %v663
        %v692 = vpack.c.bf16 %v669, %v665
        %v693 = vpack.c.bf16 %v604, %v600
        %v694 = vpack.c.bf16 %v606, %v602
        %v695 = vpack.c.bf16 %v677, %v673
        %v696 = vpack.c.bf16 %v679, %v675
        %v713 = vunpack.c.l.b16 %v681
        %v714 = vunpack.c.l.b16 %v682
        %v715 = vunpack.c.l.b16 %v683
        %v716 = vunpack.c.l.b16 %v684
        %v717 = vunpack.c.h.b16 %v681
        %v718 = vunpack.c.h.b16 %v682
        %v719 = vunpack.c.h.b16 %v683
        %v720 = vunpack.c.h.b16 %v684
        %v721 = vunpack.c.l.b16 %v685
        %v722 = vunpack.c.l.b16 %v686
        %v723 = vunpack.c.l.b16 %v687
        %v724 = vunpack.c.l.b16 %v688
        %v725 = vunpack.c.h.b16 %v685
        %v726 = vunpack.c.h.b16 %v686
        %v727 = vunpack.c.h.b16 %v687
        %v728 = vunpack.c.h.b16 %v688
        %v729 = vunpack.c.l.b16 %v689
        %v730 = vunpack.c.l.b16 %v690
        %v731 = vunpack.c.l.b16 %v691
        %v732 = vunpack.c.l.b16 %v692
        %v733 = vunpack.c.h.b16 %v689
        %v734 = vunpack.c.h.b16 %v690
        %v735 = vunpack.c.h.b16 %v691
        %v736 = vunpack.c.h.b16 %v692
        %v737 = vunpack.c.l.b16 %v693
        %v738 = vunpack.c.l.b16 %v694
        %v739 = vunpack.c.l.b16 %v695
        %v740 = vunpack.c.l.b16 %v696
        %v741 = vunpack.c.h.b16 %v693
        %v742 = vunpack.c.h.b16 %v694
        %v743 = vunpack.c.h.b16 %v695
        %v744 = vunpack.c.h.b16 %v696
        %v745 = vpack.c.b16 %v714, %v713
        %v746 = vpack.c.b16 %v716, %v715
        %v747 = vpack.c.b16 %v718, %v717
        %v748 = vpack.c.b16 %v720, %v719
        %v749 = vpack.c.b16 %v722, %v721
        %v750 = vpack.c.b16 %v724, %v723
        %v751 = vpack.c.b16 %v726, %v725
        %v752 = vpack.c.b16 %v728, %v727
        %v753 = vpack.c.b16 %v730, %v729
        %v754 = vpack.c.b16 %v732, %v731
        %v755 = vpack.c.b16 %v734, %v733
        %v756 = vpack.c.b16 %v736, %v735
        %v757 = vpack.c.b16 %v738, %v737
        %v758 = vpack.c.b16 %v740, %v739
        %v759 = vpack.c.b16 %v742, %v741
        %v760 = vpack.c.b16 %v744, %v743
        %777 = vst [vmem:[%s295] sm:$0xff] %v745
        %778 = vst [vmem:[%s295 + $0x8] sm:$0xff] %v746
        %779 = vst [vmem:[%s295 + $0x10] sm:$0xff] %v747
        %780 = vst [vmem:[%s295 + $0x18] sm:$0xff] %v748
        %781 = vst [vmem:[%s295 + $0x20] sm:$0xff] %v749
        %782 = vst [vmem:[%s295 + $0x28] sm:$0xff] %v750
        %783 = vst [vmem:[%s295 + $0x30] sm:$0xff] %v751
        %784 = vst [vmem:[%s295 + $0x38] sm:$0xff] %v752
        %785 = vst [vmem:[%s295 + $0x40] sm:$0xff] %v753
        %786 = vst [vmem:[%s295 + $0x48] sm:$0xff] %v754
        %787 = vst [vmem:[%s295 + $0x50] sm:$0xff] %v755
        %788 = vst [vmem:[%s295 + $0x58] sm:$0xff] %v756
        %789 = vst [vmem:[%s295 + $0x60] sm:$0xff] %v757
        %790 = vst [vmem:[%s295 + $0x68] sm:$0xff] %v758
        %791 = vst [vmem:[%s295 + $0x70] sm:$0xff] %v759
        %792 = vst [vmem:[%s295 + $0x78] sm:$0xff] %v760
        %v793 = vld [vmem:[#allocation7] sm:$0xff]
        %v794 = vld [vmem:[#allocation7 + $0x8] sm:$0xff]
        %v795 = vld [vmem:[#allocation7 + $0x10] sm:$0xff]
        %v796 = vld [vmem:[#allocation7 + $0x18] sm:$0xff]
        %v797 = vld [vmem:[#allocation7 + $0x20] sm:$0xff]
        %v798 = vld [vmem:[#allocation7 + $0x28] sm:$0xff]
        %v799 = vld [vmem:[#allocation7 + $0x30] sm:$0xff]
        %v800 = vld [vmem:[#allocation7 + $0x38] sm:$0xff]
        %v801 = vld [vmem:[#allocation7 + $0x40] sm:$0xff]
        %v802 = vld [vmem:[#allocation7 + $0x48] sm:$0xff]
        %v803 = vld [vmem:[#allocation7 + $0x50] sm:$0xff]
        %v804 = vld [vmem:[#allocation7 + $0x58] sm:$0xff]
        %v805 = vld [vmem:[#allocation7 + $0x60] sm:$0xff]
        %v806 = vld [vmem:[#allocation7 + $0x68] sm:$0xff]
        %v807 = vld [vmem:[#allocation7 + $0x70] sm:$0xff]
        %v808 = vld [vmem:[#allocation7 + $0x78] sm:$0xff]
        %v809 = vld [vmem:[#allocation7 + $0x80] sm:$0xff]
        %v810 = vld [vmem:[#allocation7 + $0x88] sm:$0xff]
        %v811 = vld [vmem:[#allocation7 + $0x90] sm:$0xff]
        %v812 = vld [vmem:[#allocation7 + $0x98] sm:$0xff]
        %v813 = vld [vmem:[#allocation7 + $0xa0] sm:$0xff]
        %v814 = vld [vmem:[#allocation7 + $0xa8] sm:$0xff]
        %v815 = vld [vmem:[#allocation7 + $0xb0] sm:$0xff]
        %v816 = vld [vmem:[#allocation7 + $0xb8] sm:$0xff]
        %v817 = vld [vmem:[#allocation7 + $0xc0] sm:$0xff]
        %v818 = vld [vmem:[#allocation7 + $0xc8] sm:$0xff]
        %v819 = vld [vmem:[#allocation7 + $0xd0] sm:$0xff]
        %v820 = vld [vmem:[#allocation7 + $0xd8] sm:$0xff]
        %v821 = vld [vmem:[#allocation7 + $0xe0] sm:$0xff]
        %v822 = vld [vmem:[#allocation7 + $0xe8] sm:$0xff]
        %v823 = vld [vmem:[#allocation7 + $0xf0] sm:$0xff]
        %v824 = vld [vmem:[#allocation7 + $0xf8] sm:$0xff]
        %v857 = vunpack.c.l.b16 %v793
        %v858 = vunpack.c.h.b16 %v793
        %v859 = vunpack.c.l.b16 %v794
        %v860 = vunpack.c.h.b16 %v794
        %v861 = vunpack.c.l.b16 %v795
        %v862 = vunpack.c.h.b16 %v795
        %v863 = vunpack.c.l.b16 %v796
        %v864 = vunpack.c.h.b16 %v796
        %v865 = vunpack.c.l.b16 %v797
        %v866 = vunpack.c.h.b16 %v797
        %v867 = vunpack.c.l.b16 %v798
        %v868 = vunpack.c.h.b16 %v798
        %v869 = vunpack.c.l.b16 %v799
        %v870 = vunpack.c.h.b16 %v799
        %v871 = vunpack.c.l.b16 %v800
        %v872 = vunpack.c.h.b16 %v800
        %v873 = vunpack.c.l.b16 %v801
        %v874 = vunpack.c.h.b16 %v801
        %v875 = vunpack.c.l.b16 %v802
        %v876 = vunpack.c.h.b16 %v802
        %v877 = vunpack.c.l.b16 %v803
        %v878 = vunpack.c.h.b16 %v803
        %v879 = vunpack.c.l.b16 %v804
        %v880 = vunpack.c.h.b16 %v804
        %v881 = vunpack.c.l.b16 %v805
        %v882 = vunpack.c.h.b16 %v805
        %v883 = vunpack.c.l.b16 %v806
        %v884 = vunpack.c.h.b16 %v806
        %v885 = vunpack.c.l.b16 %v807
        %v886 = vunpack.c.h.b16 %v807
        %v887 = vunpack.c.l.b16 %v808
        %v888 = vunpack.c.h.b16 %v808
        %v889 = vunpack.c.l.b16 %v809
        %v890 = vunpack.c.h.b16 %v809
        %v891 = vunpack.c.l.b16 %v810
        %v892 = vunpack.c.h.b16 %v810
        %v893 = vunpack.c.l.b16 %v811
        %v894 = vunpack.c.h.b16 %v811
        %v895 = vunpack.c.l.b16 %v812
        %v896 = vunpack.c.h.b16 %v812
        %v897 = vunpack.c.l.b16 %v813
        %v898 = vunpack.c.h.b16 %v813
        %v899 = vunpack.c.l.b16 %v814
        %v900 = vunpack.c.h.b16 %v814
        %v901 = vunpack.c.l.b16 %v815
        %v902 = vunpack.c.h.b16 %v815
        %v903 = vunpack.c.l.b16 %v816
        %v904 = vunpack.c.h.b16 %v816
        %v905 = vunpack.c.l.b16 %v817
        %v906 = vunpack.c.h.b16 %v817
        %v907 = vunpack.c.l.b16 %v818
        %v908 = vunpack.c.h.b16 %v818
        %v909 = vunpack.c.l.b16 %v819
        %v910 = vunpack.c.h.b16 %v819
        %v911 = vunpack.c.l.b16 %v820
        %v912 = vunpack.c.h.b16 %v820
        %v913 = vunpack.c.l.b16 %v821
        %v914 = vunpack.c.h.b16 %v821
        %v915 = vunpack.c.l.b16 %v822
        %v916 = vunpack.c.h.b16 %v822
        %v917 = vunpack.c.l.b16 %v823
        %v918 = vunpack.c.h.b16 %v823
        %v919 = vunpack.c.l.b16 %v824
        %v920 = vunpack.c.h.b16 %v824
        %v921 = vpack.c.b16 %v861, %v857
        %v922 = vpack.c.b16 %v862, %v858
        %v923 = vpack.c.b16 %v863, %v859
        %v924 = vpack.c.b16 %v864, %v860
        %v925 = vpack.c.b16 %v869, %v865
        %v926 = vpack.c.b16 %v870, %v866
        %v927 = vpack.c.b16 %v871, %v867
        %v928 = vpack.c.b16 %v872, %v868
        %v929 = vpack.c.b16 %v877, %v873
        %v930 = vpack.c.b16 %v878, %v874
        %v931 = vpack.c.b16 %v879, %v875
        %v932 = vpack.c.b16 %v880, %v876
        %v933 = vpack.c.b16 %v885, %v881
        %v934 = vpack.c.b16 %v886, %v882
        %v935 = vpack.c.b16 %v887, %v883
        %v936 = vpack.c.b16 %v888, %v884
        %v937 = vpack.c.b16 %v893, %v889
        %v938 = vpack.c.b16 %v894, %v890
        %v939 = vpack.c.b16 %v895, %v891
        %v940 = vpack.c.b16 %v896, %v892
        %v941 = vpack.c.b16 %v901, %v897
        %v942 = vpack.c.b16 %v902, %v898
        %v943 = vpack.c.b16 %v903, %v899
        %v944 = vpack.c.b16 %v904, %v900
        %v945 = vpack.c.b16 %v909, %v905
        %v946 = vpack.c.b16 %v910, %v906
        %v947 = vpack.c.b16 %v911, %v907
        %v948 = vpack.c.b16 %v912, %v908
        %v949 = vpack.c.b16 %v917, %v913
        %v950 = vpack.c.b16 %v918, %v914
        %v951 = vpack.c.b16 %v919, %v915
        %v952 = vpack.c.b16 %v920, %v916
        %985 = vmatprep.subr.bf16.mxu0 %v922
        %986 = vmatpush1.bf16.msra.mxu0 %v921
        %987 = vmatprep.subr.bf16.mxu0 %v926
        %988 = vmatpush1.bf16.msra.mxu0 %v925
        %989 = vmatprep.subr.bf16.mxu0 %v930
        %990 = vmatpush1.bf16.msra.mxu0 %v929
        %991 = vmatprep.subr.bf16.mxu0 %v934
        %992 = vmatpush1.bf16.msra.mxu0 %v933
        %993 = vmatprep.subr.bf16.mxu0 %v938
        %994 = vmatpush1.bf16.msra.mxu0 %v937
        %995 = vmatprep.subr.bf16.mxu0 %v942
        %996 = vmatpush1.bf16.msra.mxu0 %v941
        %997 = vmatprep.subr.bf16.mxu0 %v946
        %998 = vmatpush1.bf16.msra.mxu0 %v945
        %999 = vmatprep.subr.bf16.mxu0 %v950
        %1000 = vmatpush1.bf16.msra.mxu0 %v949
        %1001 = vmatprep.subr.bf16.mxu0 0
        %1002 = vmatpush1.bf16.msra.mxu0 0
        %1003 = vmatprep.subr.bf16.mxu0 0
        %1004 = vmatpush1.bf16.msra.mxu0 0
        %1005 = vmatprep.subr.bf16.mxu0 0
        %1006 = vmatpush1.bf16.msra.mxu0 0
        %1007 = vmatprep.subr.bf16.mxu0 0
        %1008 = vmatpush1.bf16.msra.mxu0 0
        %1009 = vmatprep.subr.bf16.mxu0 0
        %1010 = vmatpush1.bf16.msra.mxu0 0
        %1011 = vmatprep.subr.bf16.mxu0 0
        %1012 = vmatpush1.bf16.msra.mxu0 0
        %1013 = vmatprep.subr.bf16.mxu0 0
        %1014 = vmatpush1.bf16.msra.mxu0 0
        %1015 = vmatprep.subr.bf16.mxu0 0
        %1016 = vmatpush1.bf16.msra.mxu0 0
        %1017 = vmatprep.mubr.bf16.mxu0 0
        %1018 = vmatmul.mubr.bf16.gmra.mrb[0].mxu0 %v367
        %v1019 = vpop.f32.mrb[0].mxu0
        %v1020 = vadd.f32 0.0, %v1019
        %v1021 = vpop.f32.mrb[0].mxu0
        %v1022 = vadd.f32 0.0, %v1021
        %v1023 = vpop.f32.mrb[0].mxu0
        %v1024 = vadd.f32 0.0, %v1023
        %v1025 = vpop.f32.mrb[0].mxu0
        %v1026 = vadd.f32 0.0, %v1025
        %1027 = vmatprep.mubr.bf16.mxu0 0
        %1028 = vmatmul.mubr.bf16.gmra.mrb[0].mxu0 %v368
        %v1029 = vpop.f32.mrb[0].mxu0
        %v1030 = vadd.f32 0.0, %v1029
        %v1031 = vpop.f32.mrb[0].mxu0
        %v1032 = vadd.f32 0.0, %v1031
        %v1033 = vpop.f32.mrb[0].mxu0
        %v1034 = vadd.f32 0.0, %v1033
        %v1035 = vpop.f32.mrb[0].mxu0
        %v1036 = vadd.f32 0.0, %v1035
        %1037 = vmatprep.mubr.bf16.mxu0 0
        %1038 = vmatmul.mubr.bf16.gmra.mrb[0].mxu0 %v369
        %v1039 = vpop.f32.mrb[0].mxu0
        %v1040 = vadd.f32 0.0, %v1039
        %v1041 = vpop.f32.mrb[0].mxu0
        %v1042 = vadd.f32 0.0, %v1041
        %v1043 = vpop.f32.mrb[0].mxu0
        %v1044 = vadd.f32 0.0, %v1043
        %v1045 = vpop.f32.mrb[0].mxu0
        %v1046 = vadd.f32 0.0, %v1045
        %1047 = vmatprep.mubr.bf16.mxu0 0
        %1048 = vmatmul.mubr.bf16.gmra.mrb[0].mxu0 %v370
        %v1049 = vpop.f32.mrb[0].mxu0
        %v1050 = vadd.f32 0.0, %v1049
        %v1051 = vpop.f32.mrb[0].mxu0
        %v1052 = vadd.f32 0.0, %v1051
        %v1053 = vpop.f32.mrb[0].mxu0
        %v1054 = vadd.f32 0.0, %v1053
        %v1055 = vpop.f32.mrb[0].mxu0
        %v1056 = vadd.f32 0.0, %v1055
        %1057 = vdwg.mxu0
        %1058 = vmatprep.subr.bf16.mxu0 %v924
        %1059 = vmatpush1.bf16.msra.mxu0 %v923
        %1060 = vmatprep.subr.bf16.mxu0 %v928
        %1061 = vmatpush1.bf16.msra.mxu0 %v927
        %1062 = vmatprep.subr.bf16.mxu0 %v932
        %1063 = vmatpush1.bf16.msra.mxu0 %v931
        %1064 = vmatprep.subr.bf16.mxu0 %v936
        %1065 = vmatpush1.bf16.msra.mxu0 %v935
        %1066 = vmatprep.subr.bf16.mxu0 %v940
        %1067 = vmatpush1.bf16.msra.mxu0 %v939
        %1068 = vmatprep.subr.bf16.mxu0 %v944
        %1069 = vmatpush1.bf16.msra.mxu0 %v943
        %1070 = vmatprep.subr.bf16.mxu0 %v948
        %1071 = vmatpush1.bf16.msra.mxu0 %v947
        %1072 = vmatprep.subr.bf16.mxu0 %v952
        %1073 = vmatpush1.bf16.msra.mxu0 %v951
        %1074 = vmatprep.subr.bf16.mxu0 0
        %1075 = vmatpush1.bf16.msra.mxu0 0
        %1076 = vmatprep.subr.bf16.mxu0 0
        %1077 = vmatpush1.bf16.msra.mxu0 0
        %1078 = vmatprep.subr.bf16.mxu0 0
        %1079 = vmatpush1.bf16.msra.mxu0 0
        %1080 = vmatprep.subr.bf16.mxu0 0
        %1081 = vmatpush1.bf16.msra.mxu0 0
        %1082 = vmatprep.subr.bf16.mxu0 0
        %1083 = vmatpush1.bf16.msra.mxu0 0
        %1084 = vmatprep.subr.bf16.mxu0 0
        %1085 = vmatpush1.bf16.msra.mxu0 0
        %1086 = vmatprep.subr.bf16.mxu0 0
        %1087 = vmatpush1.bf16.msra.mxu0 0
        %1088 = vmatprep.subr.bf16.mxu0 0
        %1089 = vmatpush1.bf16.msra.mxu0 0
        %1090 = vmatprep.mubr.bf16.mxu0 0
        %1091 = vmatmul.mubr.bf16.gmra.mrb[0].mxu0 %v367
        %v1092 = vpop.f32.mrb[0].mxu0
        %v1093 = vadd.f32 0.0, %v1092
        %v1094 = vpop.f32.mrb[0].mxu0
        %v1095 = vadd.f32 0.0, %v1094
        %v1096 = vpop.f32.mrb[0].mxu0
        %v1097 = vadd.f32 0.0, %v1096
        %v1098 = vpop.f32.mrb[0].mxu0
        %v1099 = vadd.f32 0.0, %v1098
        %1100 = vmatprep.mubr.bf16.mxu0 0
        %1101 = vmatmul.mubr.bf16.gmra.mrb[0].mxu0 %v368
        %v1102 = vpop.f32.mrb[0].mxu0
        %v1103 = vadd.f32 0.0, %v1102
        %v1104 = vpop.f32.mrb[0].mxu0
        %v1105 = vadd.f32 0.0, %v1104
        %v1106 = vpop.f32.mrb[0].mxu0
        %v1107 = vadd.f32 0.0, %v1106
        %v1108 = vpop.f32.mrb[0].mxu0
        %v1109 = vadd.f32 0.0, %v1108
        %1110 = vmatprep.mubr.bf16.mxu0 0
        %1111 = vmatmul.mubr.bf16.gmra.mrb[0].mxu0 %v369
        %v1112 = vpop.f32.mrb[0].mxu0
        %v1113 = vadd.f32 0.0, %v1112
        %v1114 = vpop.f32.mrb[0].mxu0
        %v1115 = vadd.f32 0.0, %v1114
        %v1116 = vpop.f32.mrb[0].mxu0
        %v1117 = vadd.f32 0.0, %v1116
        %v1118 = vpop.f32.mrb[0].mxu0
        %v1119 = vadd.f32 0.0, %v1118
        %1120 = vmatprep.mubr.bf16.mxu0 0
        %1121 = vmatmul.mubr.bf16.gmra.mrb[0].mxu0 %v370
        %v1122 = vpop.f32.mrb[0].mxu0
        %v1123 = vadd.f32 0.0, %v1122
        %v1124 = vpop.f32.mrb[0].mxu0
        %v1125 = vadd.f32 0.0, %v1124
        %v1126 = vpop.f32.mrb[0].mxu0
        %v1127 = vadd.f32 0.0, %v1126
        %v1128 = vpop.f32.mrb[0].mxu0
        %v1129 = vadd.f32 0.0, %v1128
        %1130 = vdwg.mxu0
        %v1131 = vpack.c.bf16 %v1024, %v1020
        %v1132 = vpack.c.bf16 %v1026, %v1022
        %v1133 = vpack.c.bf16 %v1097, %v1093
        %v1134 = vpack.c.bf16 %v1099, %v1095
        %v1135 = vpack.c.bf16 %v1034, %v1030
        %v1136 = vpack.c.bf16 %v1036, %v1032
        %v1137 = vpack.c.bf16 %v1107, %v1103
        %v1138 = vpack.c.bf16 %v1109, %v1105
        %v1139 = vpack.c.bf16 %v1044, %v1040
        %v1140 = vpack.c.bf16 %v1046, %v1042
        %v1141 = vpack.c.bf16 %v1117, %v1113
        %v1142 = vpack.c.bf16 %v1119, %v1115
        %v1143 = vpack.c.bf16 %v1054, %v1050
        %v1144 = vpack.c.bf16 %v1056, %v1052
        %v1145 = vpack.c.bf16 %v1127, %v1123
        %v1146 = vpack.c.bf16 %v1129, %v1125
        %v1163 = vunpack.c.l.b16 %v1131
        %v1164 = vunpack.c.l.b16 %v1132
        %v1165 = vunpack.c.l.b16 %v1133
        %v1166 = vunpack.c.l.b16 %v1134
        %v1167 = vunpack.c.h.b16 %v1131
        %v1168 = vunpack.c.h.b16 %v1132
        %v1169 = vunpack.c.h.b16 %v1133
        %v1170 = vunpack.c.h.b16 %v1134
        %v1171 = vunpack.c.l.b16 %v1135
        %v1172 = vunpack.c.l.b16 %v1136
        %v1173 = vunpack.c.l.b16 %v1137
        %v1174 = vunpack.c.l.b16 %v1138
        %v1175 = vunpack.c.h.b16 %v1135
        %v1176 = vunpack.c.h.b16 %v1136
        %v1177 = vunpack.c.h.b16 %v1137
        %v1178 = vunpack.c.h.b16 %v1138
        %v1179 = vunpack.c.l.b16 %v1139
        %v1180 = vunpack.c.l.b16 %v1140
        %v1181 = vunpack.c.l.b16 %v1141
        %v1182 = vunpack.c.l.b16 %v1142
        %v1183 = vunpack.c.h.b16 %v1139
        %v1184 = vunpack.c.h.b16 %v1140
        %v1185 = vunpack.c.h.b16 %v1141
        %v1186 = vunpack.c.h.b16 %v1142
        %v1187 = vunpack.c.l.b16 %v1143
        %v1188 = vunpack.c.l.b16 %v1144
        %v1189 = vunpack.c.l.b16 %v1145
        %v1190 = vunpack.c.l.b16 %v1146
        %v1191 = vunpack.c.h.b16 %v1143
        %v1192 = vunpack.c.h.b16 %v1144
        %v1193 = vunpack.c.h.b16 %v1145
        %v1194 = vunpack.c.h.b16 %v1146
        %v1195 = vpack.c.b16 %v1164, %v1163
        %v1196 = vpack.c.b16 %v1166, %v1165
        %v1197 = vpack.c.b16 %v1168, %v1167
        %v1198 = vpack.c.b16 %v1170, %v1169
        %v1199 = vpack.c.b16 %v1172, %v1171
        %v1200 = vpack.c.b16 %v1174, %v1173
        %v1201 = vpack.c.b16 %v1176, %v1175
        %v1202 = vpack.c.b16 %v1178, %v1177
        %v1203 = vpack.c.b16 %v1180, %v1179
        %v1204 = vpack.c.b16 %v1182, %v1181
        %v1205 = vpack.c.b16 %v1184, %v1183
        %v1206 = vpack.c.b16 %v1186, %v1185
        %v1207 = vpack.c.b16 %v1188, %v1187
        %v1208 = vpack.c.b16 %v1190, %v1189
        %v1209 = vpack.c.b16 %v1192, %v1191
        %v1210 = vpack.c.b16 %v1194, %v1193
        %1227 = vst [vmem:[%s302] sm:$0xff] %v1195
        %1228 = vst [vmem:[%s302 + $0x8] sm:$0xff] %v1196
        %1229 = vst [vmem:[%s302 + $0x10] sm:$0xff] %v1197
        %1230 = vst [vmem:[%s302 + $0x18] sm:$0xff] %v1198
        %1231 = vst [vmem:[%s302 + $0x20] sm:$0xff] %v1199
        %1232 = vst [vmem:[%s302 + $0x28] sm:$0xff] %v1200
        %1233 = vst [vmem:[%s302 + $0x30] sm:$0xff] %v1201
        %1234 = vst [vmem:[%s302 + $0x38] sm:$0xff] %v1202
        %1235 = vst [vmem:[%s302 + $0x40] sm:$0xff] %v1203
        %1236 = vst [vmem:[%s302 + $0x48] sm:$0xff] %v1204
        %1237 = vst [vmem:[%s302 + $0x50] sm:$0xff] %v1205
        %1238 = vst [vmem:[%s302 + $0x58] sm:$0xff] %v1206
        %1239 = vst [vmem:[%s302 + $0x60] sm:$0xff] %v1207
        %1240 = vst [vmem:[%s302 + $0x68] sm:$0xff] %v1208
        %1241 = vst [vmem:[%s302 + $0x70] sm:$0xff] %v1209
        %1242 = vst [vmem:[%s302 + $0x78] sm:$0xff] %v1210
        %s1243 = sand.u32 %s137, 1
        %s1244 = scalar_lea.sflag [#allocation4], %s1243
        %s1245 = sand.u32 %s137, 1
        %s1246 = smul.addr %s1245, 128
        %s1247 = scalar_lea.vmem [#allocation8], %s1246
        %s1248 = sand.u32 %s167, 1
        %s1249 = scalar_lea.sflag [#allocation10], %s1248
        %s1250 = sand.u32 %s167, 1
        %s1251 = smul.addr %s1250, 128
        %s1252 = scalar_lea.vmem [#allocation9], %s1251
        // Predicated region
        $region45: #{tpu_custom_call.1} parent=31 // pred_check
          %p1253 = pneg %p147
        $region46: #{tpu_custom_call.1} parent=31 // pred_check_branch
          %1255 = sbr.rel (%p1253) target = $region48
        $region47: #{tpu_custom_call.1} parent=31 // pred_region
          %s1256 = smul.u32 8, %s32
          %s1257 = smul.u32 4, %s33
          %s1259 = ssub.s32 2048, 2048
          %1260 = vsyncadd %s1244, %s1259
          %s1261 = smul.addr %s1256, 4
          %s1262 = sadd.s32 %s1257, %s1261
          %s1263 = smul.addr %s31, 32
          %s1264 = sadd.s32 %s1262, %s1263
          %s1265 = smul.addr %s1264, 64
          %s1266 = scalar_lea.hbm %s3, %s1265
          %s1267 = sshll.u32 %s1247, 4
          %s1268 = int_to_ptr.vmem [resolvable:$true] %s1267
          %1273 = dma.vmem_to_hbm [thread:$0]  %s1268, 2048, %s1266, %s1244, 256, 256, 16
        $region48: #{tpu_custom_call.1} parent=31 // pred_fallthru
          _
        // Predicated region
        $region49: #{tpu_custom_call.1} parent=31 // pred_check
          %p1274 = pneg %p177
        $region50: #{tpu_custom_call.1} parent=31 // pred_check_branch
          %1276 = sbr.rel (%p1274) target = $region52
        $region51: #{tpu_custom_call.1} parent=31 // pred_region
          %s1277 = smul.u32 8, %s32
          %s1278 = smul.u32 4, %s33
          %s1280 = ssub.s32 2048, 2048
          %1281 = vsyncadd %s1249, %s1280
          %s1282 = smul.addr %s1277, 4
          %s1283 = sadd.s32 %s1278, %s1282
          %s1284 = smul.addr %s31, 32
          %s1285 = sadd.s32 %s1283, %s1284
          %s1286 = smul.addr %s1285, 64
          %s1287 = scalar_lea.hbm %s4, %s1286
          %s1288 = sshll.u32 %s1252, 4
          %s1289 = int_to_ptr.vmem [resolvable:$true] %s1288
          %1294 = dma.vmem_to_hbm [thread:$0]  %s1289, 2048, %s1287, %s1249, 256, 256, 16
        $region52: #{tpu_custom_call.1} parent=31 // pred_fallthru
          _
      $region32: #{tpu_custom_call.1} parent=5 // pred_fallthru
        _
      %p1295 = scmp.le.s32.totalorder 2, %s21
      // Predicated region
      $region53: #{tpu_custom_call.1} parent=5 // pred_check
        %p1296 = pneg %p1295
      $region54: #{tpu_custom_call.1} parent=5 // pred_check_branch
        %1298 = sbr.rel (%p1296) target = $region56
      $region55: #{tpu_custom_call.1} parent=5 // pred_region
        %s1299 = ssub.s32 %s21, 2
        // Predicated region
        $region57: #{tpu_custom_call.1} parent=55 // pred_check
          %p1300 = pneg %p153
        $region58: #{tpu_custom_call.1} parent=55 // pred_check_branch
          %1302 = sbr.rel (%p1300) target = $region60
        $region59: #{tpu_custom_call.1} parent=55 // pred_region
          %s1303 = sand.u32 %s138, 1
          %s1304 = scalar_lea.sflag [#allocation4], %s1303
          %s1305 = sand.u32 %s138, 1
          %s1306 = smul.addr %s1305, 128
          %s1307 = scalar_lea.vmem [#allocation8], %s1306
          %1308 = dma.done %s1304, 2048
        $region60: #{tpu_custom_call.1} parent=55 // pred_fallthru
          _
        // Predicated region
        $region61: #{tpu_custom_call.1} parent=55 // pred_check
          %p1309 = pneg %p183
        $region62: #{tpu_custom_call.1} parent=55 // pred_check_branch
          %1311 = sbr.rel (%p1309) target = $region64
        $region63: #{tpu_custom_call.1} parent=55 // pred_region
          %s1312 = sand.u32 %s168, 1
          %s1313 = scalar_lea.sflag [#allocation10], %s1312
          %s1314 = sand.u32 %s168, 1
          %s1315 = smul.addr %s1314, 128
          %s1316 = scalar_lea.vmem [#allocation9], %s1315
          %1317 = dma.done %s1313, 2048
        $region64: #{tpu_custom_call.1} parent=55 // pred_fallthru
          _
      $region56: #{tpu_custom_call.1} parent=5 // pred_fallthru
        _
    $region6: #{tpu_custom_call.1} parent=1 // loop_footer
      %s25 = sadd.s32 1, %s21
    $region7: #{tpu_custom_call.1} parent=1 // loop_footer_branch
      %20 = sbr.rel target = $region3
    $region8: #{tpu_custom_call.1} parent=1 // loop_exit
      _
    %1318 = vsyncpa [#allocation3], 1
    %s1319 = scalar_lea.sflag [#allocation3], 1
    %1320 = vsyncpa %s1319, 1
    %1321 = vsyncpa [#allocation6], 1
    %1322 = vsyncpa [#allocation4], 1
    %s1323 = scalar_lea.sflag [#allocation4], 1
    %1324 = vsyncpa %s1323, 1
    %1325 = vsyncpa [#allocation10], 1
    %s1326 = scalar_lea.sflag [#allocation10], 1
    %1327 = vsyncpa %s1326, 1

</llo_original>
